<compile_context>
chip_gen: v7x
topology: tpu7x:2x2x1
jax: 0.10.0
libtpu: 0.0.40
codegen_flags: <defaults>
</compile_context>

<pallas_src>
import functools
import math

import jax
import jax.numpy as jnp
from jax.experimental import pallas as pl
from jax.experimental.pallas import tpu as pltpu


def _patch_kernel(x_ref, o_ref, *, patch_size: int, patch_stride: int,
                  num_patches: int, pad: int, patches_per_store: int):
    """Unfold one batch tile.

    x_ref: (TB, length)                      un-padded input rows, time on lanes
    o_ref: (TB, num_patches * patch_size)    lane-dense flattened patches
    The NaN left-padding of the original module is folded in here.
    """
    tb = x_ref.shape[0]
    dt = o_ref.dtype

    # Patches that touch the NaN pad (p*stride < pad) are handled individually,
    # together with the rest of the first store-group so that the grouped wide
    # stores below stay aligned to multiples of `patches_per_store` patches.
    n_pad_patches = -(-pad // patch_stride) if pad > 0 else 0
    split = 0
    if n_pad_patches > 0:
        split = min(num_patches,
                    -(-n_pad_patches // patches_per_store) * patches_per_store)

    # ---- patches overlapping the NaN pad (and first-group stragglers) ----
    for p in range(split):
        o_lo = p * patch_size
        start = p * patch_stride - pad            # start in un-padded coords
        if start >= 0:
            o_ref[:, o_lo:o_lo + patch_size] = x_ref[:, start:start + patch_size]
        else:
            n_nan = -start                        # leading NaNs of this patch
            o_ref[:, o_lo:o_lo + n_nan] = jnp.full((tb, n_nan), jnp.nan, dt)
            o_ref[:, o_lo + n_nan:o_lo + patch_size] = x_ref[:, 0:patch_size - n_nan]

    # ---- remaining patches: one bulk load + one wide store per group ----
    for g0 in range(split, num_patches, patches_per_store):
        g1 = min(g0 + patches_per_store, num_patches)
        in_lo = g0 * patch_stride - pad
        in_hi = (g1 - 1) * patch_stride - pad + patch_size
        src = x_ref[:, in_lo:in_hi]               # single bulk load for the group
        pieces = [
            src[:, (p - g0) * patch_stride:(p - g0) * patch_stride + patch_size]
            for p in range(g0, g1)
        ]
        blk = pieces[0] if len(pieces) == 1 else jnp.concatenate(pieces, axis=-1)
        o_ref[:, g0 * patch_size:g1 * patch_size] = blk   # wide (>=128-lane) store


_VMEM_TILE_BUDGET = 24 * 1024 * 1024   # conservative: fits v7x (64 MiB physical)


def _pick_batch_tile(batch: int, row_in_bytes: int, row_out_bytes: int,
                     itemsize: int) -> int:
    """Largest sensible batch tile: multiple of sublane packing, VMEM-budgeted."""
    pack = {4: 8, 2: 16, 1: 32}.get(itemsize, 8)
    # x2 for the double-buffering Pallas uses for both the input and output tile.
    fit = _VMEM_TILE_BUDGET // max(1, 2 * (row_in_bytes + row_out_bytes))
    cap = max(pack, min(64, int(fit)))            # 64 rows keeps vreg pressure low
    if batch <= cap:
        return batch                               # one full-dim block
    return (cap // pack) * pack


def patch_forward(x: jax.Array, patch_size: int, patch_stride: int,
                  *, batch_tile: int | None = None) -> jax.Array:
    """JAX/Pallas equivalent of Patch.forward for input (..., length)."""
    if patch_size <= 0 or patch_stride <= 0:
        raise ValueError("patch_size and patch_stride must be positive")
    if not jnp.issubdtype(x.dtype, jnp.floating):
        raise TypeError("Patch pads with NaN; a floating dtype is required")

    lead = x.shape[:-1]
    length = x.shape[-1]
    batch = int(math.prod(lead)) if lead else 1
    x2 = x.reshape(batch, length)

    rem = length % patch_size
    pad = 0 if rem == 0 else patch_size - rem
    length_pad = length + pad
    if length_pad < patch_size:
        raise ValueError("padded length is shorter than patch_size")
    num_patches = (length_pad - patch_size) // patch_stride + 1
    out_cols = num_patches * patch_size

    itemsize = jnp.dtype(x.dtype).itemsize
    if batch_tile is None:
        batch_tile = _pick_batch_tile(batch, length * itemsize,
                                      out_cols * itemsize, itemsize)
    tb = min(batch_tile, batch)
    grid = (pl.cdiv(batch, tb),)

    # Group patches so each grouped store is a full 128-lane (unmasked) store.
    patches_per_store = max(1, 128 // patch_size)

    kernel = functools.partial(
        _patch_kernel,
        patch_size=patch_size,
        patch_stride=patch_stride,
        num_patches=num_patches,
        pad=pad,
        patches_per_store=patches_per_store,
    )

    out_flat = pl.pallas_call(
        kernel,
        out_shape=jax.ShapeDtypeStruct((batch, out_cols), x.dtype),
        grid=grid,
        in_specs=[pl.BlockSpec((tb, length), lambda i: (i, 0))],
        out_specs=pl.BlockSpec((tb, out_cols), lambda i: (i, 0)),
        compiler_params=pltpu.CompilerParams(
            dimension_semantics=("parallel",),       # shards batch over 2 TCs on v7x
            vmem_limit_bytes=32 * 1024 * 1024,
        ),
    )(x2)

    # Metadata-only reshape back to (..., num_patches, patch_size).
    return out_flat.reshape(*lead, num_patches, patch_size)


def _patch_reference(x: jax.Array, patch_size: int, patch_stride: int) -> jax.Array:
    """Pure-JAX reference mirroring torch unfold semantics (2-D input)."""
    batch, length = x.shape
    rem = length % patch_size
    if rem != 0:
        padw = patch_size - rem
        x = jnp.concatenate(
            (jnp.full((batch, padw), jnp.nan, dtype=x.dtype), x), axis=-1)
    length_pad = x.shape[-1]
    num_patches = (length_pad - patch_size) // patch_stride + 1
    idx = (jnp.arange(num_patches)[:, None] * patch_stride
           + jnp.arange(patch_size)[None, :])            # (P, S)
    return x[:, idx]                                     # (B, P, S)


if __name__ == "__main__":
    patch_size, patch_stride = 16, 8
    key = jax.random.PRNGKey(0)

    # Case 1: NaN left-pad path (length not a multiple of patch_size), tiny batch.
    x1 = jax.random.normal(key, (2, 30), dtype=jnp.float32)
    o1 = jax.block_until_ready(patch_forward(x1, patch_size, patch_stride))
    r1 = _patch_reference(x1, patch_size, patch_stride)
    assert o1.shape == r1.shape and o1.dtype == r1.dtype
    assert jnp.allclose(o1, r1, equal_nan=True), "case 1 mismatch"

    # Case 2: batch grid (2 tiles of 8 rows) + grouped lane-dense stores, no pad.
    x2 = jax.random.normal(jax.random.PRNGKey(0), (16, 64), dtype=jnp.float32)
    o2 = jax.block_until_ready(
        patch_forward(x2, patch_size, patch_stride, batch_tile=8))
    r2 = _patch_reference(x2, patch_size, patch_stride)
    assert o2.shape == r2.shape and o2.dtype == r2.dtype
    assert jnp.allclose(o2, r2, equal_nan=True), "case 2 mismatch"

    # Case 3: bf16 (sublane packing 16), grouped path, single full-batch block.
    x3 = jax.random.normal(jax.random.PRNGKey(0), (16, 64)).astype(jnp.bfloat16)
    o3 = jax.block_until_ready(patch_forward(x3, patch_size, patch_stride))
    r3 = _patch_reference(x3, patch_size, patch_stride)
    assert o3.shape == r3.shape and o3.dtype == r3.dtype
    assert jnp.allclose(o3.astype(jnp.float32), r3.astype(jnp.float32),
                        equal_nan=True), "case 3 mismatch"

    print("KERNEL_OK")
</pallas_src>

<mosaic_0001>
module attributes {stable_mosaic.version = 11 : i64} {
  func.func @_patch_kernel(%arg0: i32, %arg1: memref<2x30xf32, #tpu.memory_space<vmem>>, %arg2: memref<2x48xf32, #tpu.memory_space<vmem>>) attributes {dimension_semantics = [#tpu.dimension_semantics<parallel>], iteration_bounds = array<i64: 1>, scalar_prefetch = 0 : i64, scratch_operands = 0 : i64, tpu.core_type = #tpu.core_type<tc>, window_params = [{transform_indices = @transform_0, window_bounds = array<i64: 2, 30>}, {transform_indices = @transform_1, window_bounds = array<i64: 2, 48>}]} {
    %cst = arith.constant 0x7FC00000 : f32
    %0 = vector.broadcast %cst : f32 to vector<2x2xf32>
    %c0 = arith.constant 0 : index
    %c0_0 = arith.constant 0 : index
    %1 = vector.load %arg2[%c0, %c0_0] : memref<2x48xf32, #tpu.memory_space<vmem>>, vector<2x2xf32>
    tpu.vector_store %arg2[%c0, %c0_0], %0 {strides = array<i32>} : memref<2x48xf32, #tpu.memory_space<vmem>>, vector<2x2xf32>,
    %c0_1 = arith.constant 0 : index
    %c0_2 = arith.constant 0 : index
    %2 = vector.load %arg1[%c0_1, %c0_2] : memref<2x30xf32, #tpu.memory_space<vmem>>, vector<2x14xf32>
    %c0_3 = arith.constant 0 : index
    %c2 = arith.constant 2 : index
    %3 = vector.load %arg2[%c0_3, %c2] : memref<2x48xf32, #tpu.memory_space<vmem>>, vector<2x14xf32>
    tpu.vector_store %arg2[%c0_3, %c2], %2 {strides = array<i32>} : memref<2x48xf32, #tpu.memory_space<vmem>>, vector<2x14xf32>,
    %c0_4 = arith.constant 0 : index
    %c6 = arith.constant 6 : index
    %4 = vector.load %arg1[%c0_4, %c6] : memref<2x30xf32, #tpu.memory_space<vmem>>, vector<2x16xf32>
    %c0_5 = arith.constant 0 : index
    %c16 = arith.constant 16 : index
    %5 = vector.load %arg2[%c0_5, %c16] : memref<2x48xf32, #tpu.memory_space<vmem>>, vector<2x16xf32>
    tpu.vector_store %arg2[%c0_5, %c16], %4 {strides = array<i32>} : memref<2x48xf32, #tpu.memory_space<vmem>>, vector<2x16xf32>,
    %c0_6 = arith.constant 0 : index
    %c14 = arith.constant 14 : index
    %6 = vector.load %arg1[%c0_6, %c14] : memref<2x30xf32, #tpu.memory_space<vmem>>, vector<2x16xf32>
    %c0_7 = arith.constant 0 : index
    %c32 = arith.constant 32 : index
    %7 = vector.load %arg2[%c0_7, %c32] : memref<2x48xf32, #tpu.memory_space<vmem>>, vector<2x16xf32>
    tpu.vector_store %arg2[%c0_7, %c32], %6 {strides = array<i32>} : memref<2x48xf32, #tpu.memory_space<vmem>>, vector<2x16xf32>,
    return
  }
  func.func @transform_0(%arg0: i32) -> (i32, i32) {
    %c0_i32 = arith.constant 0 : i32
    %c0_i32_0 = arith.constant 0 : i32
    return %arg0, %c0_i32 : i32, i32
  }
  func.func @transform_1(%arg0: i32) -> (i32, i32) {
    %c0_i32 = arith.constant 0 : i32
    %c0_i32_0 = arith.constant 0 : i32
    return %arg0, %c0_i32 : i32, i32
  }
}

</mosaic_0001>

<llo_original>
// kernel: tpu_custom_call.1
$region0: #{tpu_custom_call.1}
  #allocation0 [shape = 'u32[]', space=smem, size = 0x4, offset = 0x4, fixed_abs, tag = 'smem constant byte address 0x4 - core index']
  #allocation1 [shape = 'u32[144,128]{1,0:T(1,128)}', space=vmem, size = 0x12000, scoped, tag = 'internal scratch']
  %s0 = inlined_call_operand.hbm [shape: f32[2,30], index: 0, kind: input, shape index: {}]
  %s1 = inlined_call_operand.hbm [shape: f32[2,48], index: 1, kind: output, shape index: {}]
  %s2 = sld [smem:[#allocation0]]
  $region18: #{tpu_custom_call.1} parent=0
    _
  %s4 = ssub.s32 1, %s2
  %s5 = scalar_select 0, %s4, %s2
  $region1: #{tpu_custom_call.1} parent=0
    #allocation2 [shape = 'u8[1024]{0}', space=vmem, size = 0x400, scoped, tag = 'input window, operand 0, single buffered']
    #allocation3 [shape = 's32[1]{0}', space=sflag, size = 0x4, scoped, tag = 'scoped memory for tpu_custom_call.1']
    #allocation4 [shape = 's32[1]{0}', space=sflag, size = 0x4, scoped, tag = 'scoped memory for tpu_custom_call.1']
    #allocation5 [shape = 'u8[1024]{0}', space=vmem, size = 0x400, scoped, tag = 'output window, operand 0, single buffered']
    %6 = vsyncpa [#allocation3], 0
    %7 = vsyncpa [#allocation4], 0
    // Predicated region
    $region2: #{tpu_custom_call.1} parent=1 // pred_check
      _
    $region3: #{tpu_custom_call.1} parent=1 // pred_check_branch
      %9 = sbr.rel (0) target = $region5
    $region4: #{tpu_custom_call.1} parent=1 // pred_region
      %s11 = ssub.s32 32, 32
      %12 = vsyncadd [#allocation3], %s11
      %s14 = sshll.u32 [#allocation2], 4
      %s15 = int_to_ptr.vmem [resolvable:$true] %s14
      %17 = dma.hbm_to_vmem [thread:$0]  %s0, 32, %s15, [#allocation3]
    $region5: #{tpu_custom_call.1} parent=1 // pred_fallthru
      _
    // Predicated region
    $region6: #{tpu_custom_call.1} parent=1 // pred_check
      _
    $region7: #{tpu_custom_call.1} parent=1 // pred_check_branch
      %19 = sbr.rel (0) target = $region9
    $region8: #{tpu_custom_call.1} parent=1 // pred_region
      %20 = dma.done [#allocation3], 32
    $region9: #{tpu_custom_call.1} parent=1 // pred_fallthru
      _
    %vm21 = vcmask 9216
    %22 = vst.msk [vmem:[#allocation5] sm:$0x3] %vm21, nan
    %v23 = vld [vmem:[#allocation2] sm:$0x3]
    %25 = vrot.lane.b32.xlu0 %v23, 2
    %v26 = vpop.permute.xlu0 %25
    %vm28 = vcmask 123920
    %29 = vst.msk [vmem:[#allocation5] sm:$0x3] %vm28, %v26
    %v30 = vld [vmem:[#allocation2] sm:$0x3]
    %32 = vrot.lane.b32.xlu0 %v30, 10
    %v33 = vpop.permute.xlu0 %32
    %vm35 = vcmask 255104
    %36 = vst.msk [vmem:[#allocation5] sm:$0x3] %vm35, %v33
    %v37 = vld [vmem:[#allocation2] sm:$0x3]
    %39 = vrot.lane.b32.xlu0 %v37, 18
    %v40 = vpop.permute.xlu0 %39
    %vm42 = vcmask 386304
    %43 = vst.msk [vmem:[#allocation5] sm:$0x3] %vm42, %v40
    // Predicated region
    $region10: #{tpu_custom_call.1} parent=1 // pred_check
      _
    $region11: #{tpu_custom_call.1} parent=1 // pred_check_branch
      %45 = sbr.rel (0) target = $region13
    $region12: #{tpu_custom_call.1} parent=1 // pred_region
      %s47 = ssub.s32 32, 32
      %48 = vsyncadd [#allocation4], %s47
      %s50 = sshll.u32 [#allocation5], 4
      %s51 = int_to_ptr.vmem [resolvable:$true] %s50
      %53 = dma.vmem_to_hbm [thread:$0]  %s51, 32, %s1, [#allocation4]
    $region13: #{tpu_custom_call.1} parent=1 // pred_fallthru
      _
    // Predicated region
    $region14: #{tpu_custom_call.1} parent=1 // pred_check
      _
    $region15: #{tpu_custom_call.1} parent=1 // pred_check_branch
      %55 = sbr.rel (0) target = $region17
    $region16: #{tpu_custom_call.1} parent=1 // pred_region
      %56 = dma.done [#allocation4], 32
    $region17: #{tpu_custom_call.1} parent=1 // pred_fallthru
      _
    %57 = vsyncpa [#allocation3], 1
    %58 = vsyncpa [#allocation4], 1

</llo_original>
